<compile_context>
chip_gen: v7x
topology: tpu7x:2x2x1
jax: 0.10.0
libtpu: 0.0.40
codegen_flags: <defaults>
</compile_context>

<pallas_src>
import functools

import jax
import jax.numpy as jnp
from jax.experimental import pallas as pl
from jax.experimental.pallas import tpu as pltpu

_LANE = 128


def _round_up(x, m):
    return (x + m - 1) // m * m


def _choose_tm(B, max_tm=512):
    """Batch tile size.

    - tiny B: one full-batch tile (block == full dim, so no padding needed)
    - otherwise: at least 2 tiles (v7x has 2 TensorCores), 8-aligned rows,
      capped at max_tm (512 fills the 256x256 MXU M dim on v6e/v7x and keeps
      per-step input/output DMAs well past the ~85%-of-roofline tile size).
    """
    if B <= 16:
        return B
    return min(max_tm, _round_up(pl.cdiv(B, 2), 8))


def _fused_mlp_kernel(x_ref, *refs, activations):
    """All layers computed on one VMEM-resident batch tile.

    refs = (w0, b0, w1, b1, ..., w_{L-1}, b_{L-1}, out_ref).
    Weights are pre-transposed bf16 [d_in(_pad), d_out_pad]; biases are f32
    [1, d_out_pad].  Matmuls use the MXU's native bf16 path with f32
    accumulation; bias add + activations stay in f32 (v5e VPU/EUP lack bf16).
    """
    out_ref = refs[-1]
    wb_refs = refs[:-1]
    n_layers = len(wb_refs) // 2

    h = x_ref[...].astype(jnp.float32)
    for layer in range(n_layers):
        w = wb_refs[2 * layer][...]        # bf16 [d_in_pad, d_out_pad]
        b = wb_refs[2 * layer + 1][...]    # f32  [1, d_out_pad]
        y = jnp.dot(h.astype(w.dtype), w,
                    preferred_element_type=jnp.float32) + b
        act = activations[layer]
        if act == "ReLU":
            y = jnp.maximum(y, 0.0)
        elif act == "tanh":
            y = jnp.tanh(y)
        elif act == "sigmoid":
            y = jax.nn.sigmoid(y)
        elif act == "none":
            pass
        else:
            raise NameError(f"activation {act} not defined")
        h = y
    out_ref[...] = h.astype(out_ref.dtype)


def fused_mlp_forward(x, padded_params, activations, *, max_tm=512):
    """x: [B, d0] (unpadded).
    padded_params: [(W^T bf16 [d_in(_pad), d_out_pad], b f32 [1, d_out_pad])].
    Returns the padded output [B_pad, d_last_pad]; caller slices to real shape.
    """
    B, d0 = x.shape
    d_in0 = padded_params[0][0].shape[0]     # first-layer rows (8-aligned d0)
    dL_pad = padded_params[-1][0].shape[1]   # last-layer padded out dim

    tm = _choose_tm(B, max_tm)
    n_tiles = pl.cdiv(B, tm)
    B_pad = n_tiles * tm

    x_in = x.astype(jnp.float32)
    if B_pad != B or d_in0 != d0:
        # Cheap remainder pad only; in the common aligned case x passes
        # straight through with no extra HBM round trip.
        x_in = jnp.pad(x_in, ((0, B_pad - B), (0, d_in0 - d0)))

    # VMEM estimate: params single-buffered, x/out tiles double-buffered,
    # two live f32 intermediates.  Limit only set when needed, with a
    # generation-aware cap.
    param_bytes = sum(int(w.size) * w.dtype.itemsize +
                      int(b.size) * b.dtype.itemsize
                      for (w, b) in padded_params)
    max_width = max([d_in0] + [w.shape[1] for (w, _) in padded_params])
    est = (param_bytes
           + 2 * 4 * tm * (d_in0 + dL_pad)
           + 2 * 4 * tm * max_width)
    vmem_limit = None
    if est > (12 << 20):   # approaching v5e's 16 MiB default scoped limit
        try:
            phys = int(pltpu.get_tpu_info().vmem_capacity_bytes)
        except Exception:
            phys = 64 << 20          # conservative: v7x per-TC VMEM
        cap = int(phys * 0.8)        # headroom for compiler-internal scratch
        vmem_limit = min(_round_up(int(est * 1.3), 1 << 20), cap)
    # TODO(synk): if a single bf16 weight exceeds ~1/3 of usable VMEM (v7x:
    # ~20 MiB), tile that layer over d_out with a second grid axis instead of
    # keeping it whole-weight resident.

    flat_params = []
    for (w, b) in padded_params:
        flat_params += [w, b]

    def build_and_run(single_buffer_params):
        in_specs = [pl.BlockSpec((tm, d_in0), lambda i: (i, 0))]
        for (w, b) in padded_params:
            if single_buffer_params:
                # Constant index_map across the batch grid -> fetched once;
                # Buffered(1) drops the pointless second pipeline buffer.
                in_specs.append(pl.BlockSpec(w.shape, lambda i: (0, 0),
                                             pipeline_mode=pl.Buffered(1)))
                in_specs.append(pl.BlockSpec(b.shape, lambda i: (0, 0),
                                             pipeline_mode=pl.Buffered(1)))
            else:
                in_specs.append(pl.BlockSpec(w.shape, lambda i: (0, 0)))
                in_specs.append(pl.BlockSpec(b.shape, lambda i: (0, 0)))
        kernel = functools.partial(_fused_mlp_kernel,
                                   activations=tuple(activations))
        return pl.pallas_call(
            kernel,
            out_shape=jax.ShapeDtypeStruct((B_pad, dL_pad), jnp.float32),
            grid=(n_tiles,),
            in_specs=in_specs,
            out_specs=pl.BlockSpec((tm, dL_pad), lambda i: (i, 0)),
            compiler_params=pltpu.CompilerParams(
                dimension_semantics=("parallel",),  # v7x: shard tiles on 2 TCs
                vmem_limit_bytes=vmem_limit),
        )(x_in, *flat_params)

    try:
        return build_and_run(True)
    except Exception:
        # Safety net: fall back to default double-buffered params if this JAX
        # build rejects single-buffered operands.
        return build_and_run(False)


class FullyConnectedPallas:
    """JAX/Pallas MLP (the forward used for the RnnTag translation).

    Matches PyTorch nn.Linear semantics y = x @ W.T + b with default init
    (weights bf16-rounded for the MXU; accumulation, bias and activations f32).
    dropout with the default p=0.0 (and eval mode) is the identity.
    """

    def __init__(self, input_dim, hid_dims, output_dim,
                 non_linearity="ReLU", dropout=0.0, key=None):
        if non_linearity not in ("ReLU", "tanh", "sigmoid"):
            raise NameError(f"activation {non_linearity} not defined")
        # TODO(synk): stochastic dropout (p>0, training mode) not implemented;
        #             p=0.0 (the default) is an exact identity.
        del dropout
        self.act = non_linearity
        self.output_dim = output_dim
        dims = [input_dim] + list(hid_dims) + [output_dim]
        if key is None:
            key = jax.random.PRNGKey(0)

        self.params = []         # unpadded f32 (W^T [in,out], b [out]) for ref
        self.padded_params = []  # (bf16 padded W^T, f32 bias [1, out_pad])
        in_pad = _round_up(input_dim, 8)   # layer-0 contraction: 8-align only
        for d_in, d_out in zip(dims[:-1], dims[1:]):
            key, kw, kb = jax.random.split(key, 3)
            # PyTorch nn.Linear default init: U(-1/sqrt(in), 1/sqrt(in))
            bound = 1.0 / (d_in ** 0.5)
            w = jax.random.uniform(kw, (d_out, d_in), jnp.float32, -bound, bound)
            b = jax.random.uniform(kb, (d_out,), jnp.float32, -bound, bound)
            w_t = w.T
            self.params.append((w_t, b))

            out_pad = _round_up(d_out, _LANE)
            w_p = (jnp.zeros((in_pad, out_pad), jnp.float32)
                   .at[:d_in, :d_out].set(w_t).astype(jnp.bfloat16))
            b_p = jnp.zeros((1, out_pad), jnp.float32).at[0, :d_out].set(b)
            self.padded_params.append((w_p, b_p))
            in_pad = out_pad   # next layer's input = this layer's padded out

        # hidden layers use the chosen nonlinearity; final layer is linear
        self.activations = [self.act] * (len(self.padded_params) - 1) + ["none"]

    def __call__(self, x):
        B = x.shape[0]
        out_pad = fused_mlp_forward(x, self.padded_params, self.activations)
        return out_pad[:B, :self.output_dim]


if __name__ == "__main__":
    key = jax.random.PRNGKey(0)
    k_in, k_model = jax.random.split(key)

    batch = 8
    input_dim = 32
    hid_dims = [64, 64]
    output_dim = 16

    x = jax.random.normal(k_in, (batch, input_dim), dtype=jnp.float32)

    model = FullyConnectedPallas(input_dim, hid_dims, output_dim,
                                 non_linearity="ReLU", dropout=0.0,
                                 key=k_model)

    out = jax.block_until_ready(model(x))

    # pure-JAX reference using the SAME bf16-rounded weights / bf16 LHS path
    ref = x.astype(jnp.float32)
    for (w_t, b), act in zip(model.params, model.activations):
        y = jnp.dot(ref.astype(jnp.bfloat16), w_t.astype(jnp.bfloat16),
                    preferred_element_type=jnp.float32) + b
        if act == "ReLU":
            y = jnp.maximum(y, 0.0)
        elif act == "tanh":
            y = jnp.tanh(y)
        elif act == "sigmoid":
            y = jax.nn.sigmoid(y)
        ref = y

    assert out.shape == (batch, output_dim)
    max_err = float(jnp.max(jnp.abs(out - ref)))
    assert jnp.allclose(out, ref, atol=2e-2, rtol=2e-2), max_err

    print("KERNEL_OK")
</pallas_src>

<mosaic_0001>
module attributes {stable_mosaic.version = 11 : i64} {
  func.func @_fused_mlp_kernel(%arg0: i32, %arg1: memref<8x32xf32, #tpu.memory_space<vmem>>, %arg2: memref<32x128xbf16, #tpu.memory_space<vmem>>, %arg3: memref<1x128xf32, #tpu.memory_space<vmem>>, %arg4: memref<128x128xbf16, #tpu.memory_space<vmem>>, %arg5: memref<1x128xf32, #tpu.memory_space<vmem>>, %arg6: memref<128x128xbf16, #tpu.memory_space<vmem>>, %arg7: memref<1x128xf32, #tpu.memory_space<vmem>>, %arg8: memref<8x128xf32, #tpu.memory_space<vmem>>) attributes {dimension_semantics = [#tpu.dimension_semantics<parallel>], iteration_bounds = array<i64: 1>, scalar_prefetch = 0 : i64, scratch_operands = 0 : i64, tpu.core_type = #tpu.core_type<tc>, window_params = [{transform_indices = @transform_0, window_bounds = array<i64: 8, 32>}, {pipeline_mode = #tpu.pipeline_mode<synchronous>, transform_indices = @transform_1, window_bounds = array<i64: 32, 128>}, {pipeline_mode = #tpu.pipeline_mode<synchronous>, transform_indices = @transform_2, window_bounds = array<i64: 1, 128>}, {pipeline_mode = #tpu.pipeline_mode<synchronous>, transform_indices = @transform_3, window_bounds = array<i64: 128, 128>}, {pipeline_mode = #tpu.pipeline_mode<synchronous>, transform_indices = @transform_4, window_bounds = array<i64: 1, 128>}, {pipeline_mode = #tpu.pipeline_mode<synchronous>, transform_indices = @transform_5, window_bounds = array<i64: 128, 128>}, {pipeline_mode = #tpu.pipeline_mode<synchronous>, transform_indices = @transform_6, window_bounds = array<i64: 1, 128>}, {transform_indices = @transform_7, window_bounds = array<i64: 8, 128>}]} {
    %c0 = arith.constant 0 : index
    %c0_0 = arith.constant 0 : index
    %0 = vector.load %arg1[%c0, %c0_0] : memref<8x32xf32, #tpu.memory_space<vmem>>, vector<8x32xf32>
    %c0_1 = arith.constant 0 : index
    %c0_2 = arith.constant 0 : index
    %1 = vector.load %arg2[%c0_1, %c0_2] : memref<32x128xbf16, #tpu.memory_space<vmem>>, vector<32x128xbf16>
    %c0_3 = arith.constant 0 : index
    %c0_4 = arith.constant 0 : index
    %2 = vector.load %arg3[%c0_3, %c0_4] : memref<1x128xf32, #tpu.memory_space<vmem>>, vector<1x128xf32>
    %3 = arith.truncf %0 : vector<8x32xf32> to vector<8x32xbf16>
    %cst = arith.constant dense<0.000000e+00> : vector<8x128xf32>
    %4 = tpu.matmul %3, %1, %cst {dimension_numbers = #tpu.dot_dimension_numbers<[1], [0], [0], [1], [0, 0, 1, 1], [], []>} : vector<8x32xbf16>, vector<32x128xbf16>, vector<8x128xf32> -> vector<8x128xf32>
    %5 = vector.broadcast %2 : vector<1x128xf32> to vector<8x128xf32>
    %6 = arith.addf %4, %5 : vector<8x128xf32>
    %cst_5 = arith.constant 0.000000e+00 : f32
    %7 = vector.broadcast %cst_5 : f32 to vector<8x128xf32>
    %8 = arith.maximumf %6, %7 : vector<8x128xf32>
    %c0_6 = arith.constant 0 : index
    %c0_7 = arith.constant 0 : index
    %9 = vector.load %arg4[%c0_6, %c0_7] : memref<128x128xbf16, #tpu.memory_space<vmem>>, vector<128x128xbf16>
    %c0_8 = arith.constant 0 : index
    %c0_9 = arith.constant 0 : index
    %10 = vector.load %arg5[%c0_8, %c0_9] : memref<1x128xf32, #tpu.memory_space<vmem>>, vector<1x128xf32>
    %11 = arith.truncf %8 : vector<8x128xf32> to vector<8x128xbf16>
    %cst_10 = arith.constant dense<0.000000e+00> : vector<8x128xf32>
    %12 = tpu.matmul %11, %9, %cst_10 {dimension_numbers = #tpu.dot_dimension_numbers<[1], [0], [0], [1], [0, 0, 1, 1], [], []>} : vector<8x128xbf16>, vector<128x128xbf16>, vector<8x128xf32> -> vector<8x128xf32>
    %13 = vector.broadcast %10 : vector<1x128xf32> to vector<8x128xf32>
    %14 = arith.addf %12, %13 : vector<8x128xf32>
    %cst_11 = arith.constant 0.000000e+00 : f32
    %15 = vector.broadcast %cst_11 : f32 to vector<8x128xf32>
    %16 = arith.maximumf %14, %15 : vector<8x128xf32>
    %c0_12 = arith.constant 0 : index
    %c0_13 = arith.constant 0 : index
    %17 = vector.load %arg6[%c0_12, %c0_13] : memref<128x128xbf16, #tpu.memory_space<vmem>>, vector<128x128xbf16>
    %c0_14 = arith.constant 0 : index
    %c0_15 = arith.constant 0 : index
    %18 = vector.load %arg7[%c0_14, %c0_15] : memref<1x128xf32, #tpu.memory_space<vmem>>, vector<1x128xf32>
    %19 = arith.truncf %16 : vector<8x128xf32> to vector<8x128xbf16>
    %cst_16 = arith.constant dense<0.000000e+00> : vector<8x128xf32>
    %20 = tpu.matmul %19, %17, %cst_16 {dimension_numbers = #tpu.dot_dimension_numbers<[1], [0], [0], [1], [0, 0, 1, 1], [], []>} : vector<8x128xbf16>, vector<128x128xbf16>, vector<8x128xf32> -> vector<8x128xf32>
    %21 = vector.broadcast %18 : vector<1x128xf32> to vector<8x128xf32>
    %22 = arith.addf %20, %21 : vector<8x128xf32>
    %c0_17 = arith.constant 0 : index
    %c0_18 = arith.constant 0 : index
    %23 = vector.load %arg8[%c0_17, %c0_18] : memref<8x128xf32, #tpu.memory_space<vmem>>, vector<8x128xf32>
    tpu.vector_store %arg8[%c0_17, %c0_18], %22 {strides = array<i32>} : memref<8x128xf32, #tpu.memory_space<vmem>>, vector<8x128xf32>,
    return
  }
  func.func @transform_0(%arg0: i32) -> (i32, i32) {
    %c0_i32 = arith.constant 0 : i32
    %c0_i32_0 = arith.constant 0 : i32
    return %arg0, %c0_i32 : i32, i32
  }
  func.func @transform_1(%arg0: i32) -> (i32, i32) {
    %c0_i32 = arith.constant 0 : i32
    %c0_i32_0 = arith.constant 0 : i32
    %c0_i32_1 = arith.constant 0 : i32
    return %c0_i32, %c0_i32_0 : i32, i32
  }
  func.func @transform_2(%arg0: i32) -> (i32, i32) {
    %c0_i32 = arith.constant 0 : i32
    %c0_i32_0 = arith.constant 0 : i32
    %c0_i32_1 = arith.constant 0 : i32
    return %c0_i32, %c0_i32_0 : i32, i32
  }
  func.func @transform_3(%arg0: i32) -> (i32, i32) {
    %c0_i32 = arith.constant 0 : i32
    %c0_i32_0 = arith.constant 0 : i32
    %c0_i32_1 = arith.constant 0 : i32
    return %c0_i32, %c0_i32_0 : i32, i32
  }
  func.func @transform_4(%arg0: i32) -> (i32, i32) {
    %c0_i32 = arith.constant 0 : i32
    %c0_i32_0 = arith.constant 0 : i32
    %c0_i32_1 = arith.constant 0 : i32
    return %c0_i32, %c0_i32_0 : i32, i32
  }
  func.func @transform_5(%arg0: i32) -> (i32, i32) {
    %c0_i32 = arith.constant 0 : i32
    %c0_i32_0 = arith.constant 0 : i32
    %c0_i32_1 = arith.constant 0 : i32
    return %c0_i32, %c0_i32_0 : i32, i32
  }
  func.func @transform_6(%arg0: i32) -> (i32, i32) {
    %c0_i32 = arith.constant 0 : i32
    %c0_i32_0 = arith.constant 0 : i32
    %c0_i32_1 = arith.constant 0 : i32
    return %c0_i32, %c0_i32_0 : i32, i32
  }
  func.func @transform_7(%arg0: i32) -> (i32, i32) {
    %c0_i32 = arith.constant 0 : i32
    %c0_i32_0 = arith.constant 0 : i32
    return %arg0, %c0_i32 : i32, i32
  }
}

module attributes {stable_mosaic.version = 11 : i64} {
  func.func @_fused_mlp_kernel(%arg0: i32, %arg1: memref<8x32xf32, #tpu.memory_space<vmem>>, %arg2: memref<32x128xbf16, #tpu.memory_space<vmem>>, %arg3: memref<1x128xf32, #tpu.memory_space<vmem>>, %arg4: memref<128x128xbf16, #tpu.memory_space<vmem>>, %arg5: memref<1x128xf32, #tpu.memory_space<vmem>>, %arg6: memref<128x128xbf16, #tpu.memory_space<vmem>>, %arg7: memref<1x128xf32, #tpu.memory_space<vmem>>, %arg8: memref<8x128xf32, #tpu.memory_space<vmem>>) attributes {dimension_semantics = [#tpu.dimension_semantics<parallel>], iteration_bounds = array<i64: 1>, scalar_prefetch = 0 : i64, scratch_operands = 0 : i64, tpu.core_type = #tpu.core_type<tc>, window_params = [{transform_indices = @transform_0, window_bounds = array<i64: 8, 32>}, {pipeline_mode = #tpu.pipeline_mode<synchronous>, transform_indices = @transform_1, window_bounds = array<i64: 32, 128>}, {pipeline_mode = #tpu.pipeline_mode<synchronous>, transform_indices = @transform_2, window_bounds = array<i64: 1, 128>}, {pipeline_mode = #tpu.pipeline_mode<synchronous>, transform_indices = @transform_3, window_bounds = array<i64: 128, 128>}, {pipeline_mode = #tpu.pipeline_mode<synchronous>, transform_indices = @transform_4, window_bounds = array<i64: 1, 128>}, {pipeline_mode = #tpu.pipeline_mode<synchronous>, transform_indices = @transform_5, window_bounds = array<i64: 128, 128>}, {pipeline_mode = #tpu.pipeline_mode<synchronous>, transform_indices = @transform_6, window_bounds = array<i64: 1, 128>}, {transform_indices = @transform_7, window_bounds = array<i64: 8, 128>}]} {
    %c0 = arith.constant 0 : index
    %c0_0 = arith.constant 0 : index
    %0 = vector.load %arg1[%c0, %c0_0] : memref<8x32xf32, #tpu.memory_space<vmem>>, vector<8x32xf32>
    %c0_1 = arith.constant 0 : index
    %c0_2 = arith.constant 0 : index
    %1 = vector.load %arg2[%c0_1, %c0_2] : memref<32x128xbf16, #tpu.memory_space<vmem>>, vector<32x128xbf16>
    %c0_3 = arith.constant 0 : index
    %c0_4 = arith.constant 0 : index
    %2 = vector.load %arg3[%c0_3, %c0_4] : memref<1x128xf32, #tpu.memory_space<vmem>>, vector<1x128xf32>
    %3 = arith.truncf %0 : vector<8x32xf32> to vector<8x32xbf16>
    %cst = arith.constant dense<0.000000e+00> : vector<8x128xf32>
    %4 = tpu.matmul %3, %1, %cst {dimension_numbers = #tpu.dot_dimension_numbers<[1], [0], [0], [1], [0, 0, 1, 1], [], []>} : vector<8x32xbf16>, vector<32x128xbf16>, vector<8x128xf32> -> vector<8x128xf32>
    %5 = vector.broadcast %2 : vector<1x128xf32> to vector<8x128xf32>
    %6 = arith.addf %4, %5 : vector<8x128xf32>
    %cst_5 = arith.constant 0.000000e+00 : f32
    %7 = vector.broadcast %cst_5 : f32 to vector<8x128xf32>
    %8 = arith.maximumf %6, %7 : vector<8x128xf32>
    %c0_6 = arith.constant 0 : index
    %c0_7 = arith.constant 0 : index
    %9 = vector.load %arg4[%c0_6, %c0_7] : memref<128x128xbf16, #tpu.memory_space<vmem>>, vector<128x128xbf16>
    %c0_8 = arith.constant 0 : index
    %c0_9 = arith.constant 0 : index
    %10 = vector.load %arg5[%c0_8, %c0_9] : memref<1x128xf32, #tpu.memory_space<vmem>>, vector<1x128xf32>
    %11 = arith.truncf %8 : vector<8x128xf32> to vector<8x128xbf16>
    %cst_10 = arith.constant dense<0.000000e+00> : vector<8x128xf32>
    %12 = tpu.matmul %11, %9, %cst_10 {dimension_numbers = #tpu.dot_dimension_numbers<[1], [0], [0], [1], [0, 0, 1, 1], [], []>} : vector<8x128xbf16>, vector<128x128xbf16>, vector<8x128xf32> -> vector<8x128xf32>
    %13 = vector.broadcast %10 : vector<1x128xf32> to vector<8x128xf32>
    %14 = arith.addf %12, %13 : vector<8x128xf32>
    %cst_11 = arith.constant 0.000000e+00 : f32
    %15 = vector.broadcast %cst_11 : f32 to vector<8x128xf32>
    %16 = arith.maximumf %14, %15 : vector<8x128xf32>
    %c0_12 = arith.constant 0 : index
    %c0_13 = arith.constant 0 : index
    %17 = vector.load %arg6[%c0_12, %c0_13] : memref<128x128xbf16, #tpu.memory_space<vmem>>, vector<128x128xbf16>
    %c0_14 = arith.constant 0 : index
    %c0_15 = arith.constant 0 : index
    %18 = vector.load %arg7[%c0_14, %c0_15] : memref<1x128xf32, #tpu.memory_space<vmem>>, vector<1x128xf32>
    %19 = arith.truncf %16 : vector<8x128xf32> to vector<8x128xbf16>
    %cst_16 = arith.constant dense<0.000000e+00> : vector<8x128xf32>
    %20 = tpu.matmul %19, %17, %cst_16 {dimension_numbers = #tpu.dot_dimension_numbers<[1], [0], [0], [1], [0, 0, 1, 1], [], []>} : vector<8x128xbf16>, vector<128x128xbf16>, vector<8x128xf32> -> vector<8x128xf32>
    %21 = vector.broadcast %18 : vector<1x128xf32> to vector<8x128xf32>
    %22 = arith.addf %20, %21 : vector<8x128xf32>
    %c0_17 = arith.constant 0 : index
    %c0_18 = arith.constant 0 : index
    %23 = vector.load %arg8[%c0_17, %c0_18] : memref<8x128xf32, #tpu.memory_space<vmem>>, vector<8x128xf32>
    tpu.vector_store %arg8[%c0_17, %c0_18], %22 {strides = array<i32>} : memref<8x128xf32, #tpu.memory_space<vmem>>, vector<8x128xf32>,
    return
  }
  func.func @transform_0(%arg0: i32) -> (i32, i32) {
    %c0_i32 = arith.constant 0 : i32
    %c0_i32_0 = arith.constant 0 : i32
    return %arg0, %c0_i32 : i32, i32
  }
  func.func @transform_1(%arg0: i32) -> (i32, i32) {
    %c0_i32 = arith.constant 0 : i32
    %c0_i32_0 = arith.constant 0 : i32
    %c0_i32_1 = arith.constant 0 : i32
    return %c0_i32, %c0_i32_0 : i32, i32
  }
  func.func @transform_2(%arg0: i32) -> (i32, i32) {
    %c0_i32 = arith.constant 0 : i32
    %c0_i32_0 = arith.constant 0 : i32
    %c0_i32_1 = arith.constant 0 : i32
    return %c0_i32, %c0_i32_0 : i32, i32
  }
  func.func @transform_3(%arg0: i32) -> (i32, i32) {
    %c0_i32 = arith.constant 0 : i32
    %c0_i32_0 = arith.constant 0 : i32
    %c0_i32_1 = arith.constant 0 : i32
    return %c0_i32, %c0_i32_0 : i32, i32
  }
  func.func @transform_4(%arg0: i32) -> (i32, i32) {
    %c0_i32 = arith.constant 0 : i32
    %c0_i32_0 = arith.constant 0 : i32
    %c0_i32_1 = arith.constant 0 : i32
    return %c0_i32, %c0_i32_0 : i32, i32
  }
  func.func @transform_5(%arg0: i32) -> (i32, i32) {
    %c0_i32 = arith.constant 0 : i32
    %c0_i32_0 = arith.constant 0 : i32
    %c0_i32_1 = arith.constant 0 : i32
    return %c0_i32, %c0_i32_0 : i32, i32
  }
  func.func @transform_6(%arg0: i32) -> (i32, i32) {
    %c0_i32 = arith.constant 0 : i32
    %c0_i32_0 = arith.constant 0 : i32
    %c0_i32_1 = arith.constant 0 : i32
    return %c0_i32, %c0_i32_0 : i32, i32
  }
  func.func @transform_7(%arg0: i32) -> (i32, i32) {
    %c0_i32 = arith.constant 0 : i32
    %c0_i32_0 = arith.constant 0 : i32
    return %arg0, %c0_i32 : i32, i32
  }
}

</mosaic_0001>

<llo_original>
// kernel: tpu_custom_call.1
$region0: #{tpu_custom_call.1}
  #allocation0 [shape = 'u32[]', space=smem, size = 0x4, offset = 0x4, fixed_abs, tag = 'smem constant byte address 0x4 - core index']
  #allocation1 [shape = 'u32[144,128]{1,0:T(1,128)}', space=vmem, size = 0x12000, scoped, tag = 'internal scratch']
  %s0 = inlined_call_operand.hbm [shape: f32[8,32], index: 0, kind: input, shape index: {}]
  %s1 = inlined_call_operand.hbm [shape: bf16[32,128], index: 1, kind: input, shape index: {}]
  %s2 = inlined_call_operand.vmem [shape: f32[1,128], index: 2, kind: input, shape index: {}]
  %s3 = inlined_call_operand.hbm [shape: bf16[128,128], index: 3, kind: input, shape index: {}]
  %s4 = inlined_call_operand.vmem [shape: f32[1,128], index: 4, kind: input, shape index: {}]
  %s5 = inlined_call_operand.hbm [shape: bf16[128,128], index: 5, kind: input, shape index: {}]
  %s6 = inlined_call_operand.vmem [shape: f32[1,128], index: 6, kind: input, shape index: {}]
  %s7 = inlined_call_operand.hbm [shape: f32[8,128], index: 7, kind: output, shape index: {}]
  %s8 = sld [smem:[#allocation0]]
  $region54: #{tpu_custom_call.1} parent=0
    _
  %s10 = ssub.s32 1, %s8
  %s11 = scalar_select 0, %s10, %s8
  $region1: #{tpu_custom_call.1} parent=0
    #allocation2 [shape = 'u8[4096]{0}', space=vmem, size = 0x1000, scoped, tag = 'input window, operand 0, single buffered']
    #allocation3 [shape = 's32[1]{0}', space=sflag, size = 0x4, scoped, tag = 'scoped memory for tpu_custom_call.1']
    #allocation4 [shape = 's32[1]{0}', space=sflag, size = 0x4, scoped, tag = 'scoped memory for tpu_custom_call.1']
    #allocation5 [shape = 'u8[8192]{0}', space=vmem, size = 0x2000, scoped, tag = 'input window, operand 1, single buffered']
    #allocation6 [shape = 's32[1]{0}', space=sflag, size = 0x4, scoped, tag = 'scoped memory for tpu_custom_call.1']
    #allocation7 [shape = 'u8[32768]{0}', space=vmem, size = 0x8000, scoped, tag = 'input window, operand 3, single buffered']
    #allocation8 [shape = 'u8[32768]{0}', space=vmem, size = 0x8000, scoped, tag = 'input window, operand 5, single buffered']
    #allocation9 [shape = 's32[1]{0}', space=sflag, size = 0x4, scoped, tag = 'scoped memory for tpu_custom_call.1']
    #allocation10 [shape = 'u8[4096]{0}', space=vmem, size = 0x1000, scoped, tag = 'output window, operand 0, single buffered']
    %12 = vsyncpa [#allocation3], 0
    %13 = vsyncpa [#allocation6], 0
    %14 = vsyncpa [#allocation9], 0
    %15 = vsyncpa [#allocation4], 0
    // Predicated region
    $region2: #{tpu_custom_call.1} parent=1 // pred_check
      _
    $region3: #{tpu_custom_call.1} parent=1 // pred_check_branch
      %17 = sbr.rel (0) target = $region5
    $region4: #{tpu_custom_call.1} parent=1 // pred_region
      %s19 = ssub.s32 128, 128
      %20 = vsyncadd [#allocation3], %s19
      %s22 = sshll.u32 [#allocation2], 4
      %s23 = int_to_ptr.vmem [resolvable:$true] %s22
      %25 = dma.hbm_to_vmem [thread:$0]  %s0, 128, %s23, [#allocation3]
    $region5: #{tpu_custom_call.1} parent=1 // pred_fallthru
      _
    // Predicated region
    $region6: #{tpu_custom_call.1} parent=1 // pred_check
      _
    $region7: #{tpu_custom_call.1} parent=1 // pred_check_branch
      %27 = sbr.rel (0) target = $region9
    $region8: #{tpu_custom_call.1} parent=1 // pred_region
      %s29 = ssub.s32 256, 256
      %30 = vsyncadd [#allocation6], %s29
      %s31 = sshll.u32 [#allocation5], 4
      %s32 = int_to_ptr.vmem [resolvable:$true] %s31
      %37 = dma.hbm_to_vmem [thread:$0]  %s1, 256, %s32, [#allocation6], 64, 64, 4
    $region9: #{tpu_custom_call.1} parent=1 // pred_fallthru
      _
    // Predicated region
    $region10: #{tpu_custom_call.1} parent=1 // pred_check
      _
    $region11: #{tpu_custom_call.1} parent=1 // pred_check_branch
      %39 = sbr.rel (0) target = $region13
    $region12: #{tpu_custom_call.1} parent=1 // pred_region
      _
    $region13: #{tpu_custom_call.1} parent=1 // pred_fallthru
      _
    // Predicated region
    $region14: #{tpu_custom_call.1} parent=1 // pred_check
      _
    $region15: #{tpu_custom_call.1} parent=1 // pred_check_branch
      %41 = sbr.rel (0) target = $region17
    $region16: #{tpu_custom_call.1} parent=1 // pred_region
      %s43 = ssub.s32 1024, 1024
      %44 = vsyncadd [#allocation6], %s43
      %s45 = sshll.u32 [#allocation7], 4
      %s46 = int_to_ptr.vmem [resolvable:$true] %s45
      %51 = dma.hbm_to_vmem [thread:$0]  %s3, 1024, %s46, [#allocation6], 64, 64, 4
    $region17: #{tpu_custom_call.1} parent=1 // pred_fallthru
      _
    // Predicated region
    $region18: #{tpu_custom_call.1} parent=1 // pred_check
      _
    $region19: #{tpu_custom_call.1} parent=1 // pred_check_branch
      %53 = sbr.rel (0) target = $region21
    $region20: #{tpu_custom_call.1} parent=1 // pred_region
      _
    $region21: #{tpu_custom_call.1} parent=1 // pred_fallthru
      _
    // Predicated region
    $region22: #{tpu_custom_call.1} parent=1 // pred_check
      _
    $region23: #{tpu_custom_call.1} parent=1 // pred_check_branch
      %55 = sbr.rel (0) target = $region25
    $region24: #{tpu_custom_call.1} parent=1 // pred_region
      %s57 = ssub.s32 1024, 1024
      %58 = vsyncadd [#allocation9], %s57
      %s59 = sshll.u32 [#allocation8], 4
      %s60 = int_to_ptr.vmem [resolvable:$true] %s59
      %65 = dma.hbm_to_vmem [thread:$0]  %s5, 1024, %s60, [#allocation9], 64, 64, 4
    $region25: #{tpu_custom_call.1} parent=1 // pred_fallthru
      _
    // Predicated region
    $region26: #{tpu_custom_call.1} parent=1 // pred_check
      _
    $region27: #{tpu_custom_call.1} parent=1 // pred_check_branch
      %67 = sbr.rel (0) target = $region29
    $region28: #{tpu_custom_call.1} parent=1 // pred_region
      _
    $region29: #{tpu_custom_call.1} parent=1 // pred_fallthru
      _
    // Predicated region
    $region30: #{tpu_custom_call.1} parent=1 // pred_check
      _
    $region31: #{tpu_custom_call.1} parent=1 // pred_check_branch
      %69 = sbr.rel (0) target = $region33
    $region32: #{tpu_custom_call.1} parent=1 // pred_region
      %70 = dma.done [#allocation3], 128
    $region33: #{tpu_custom_call.1} parent=1 // pred_fallthru
      _
    // Predicated region
    $region34: #{tpu_custom_call.1} parent=1 // pred_check
      _
    $region35: #{tpu_custom_call.1} parent=1 // pred_check_branch
      %72 = sbr.rel (0) target = $region37
    $region36: #{tpu_custom_call.1} parent=1 // pred_region
      %73 = dma.done [#allocation6], 256
    $region37: #{tpu_custom_call.1} parent=1 // pred_fallthru
      _
    // Predicated region
    $region38: #{tpu_custom_call.1} parent=1 // pred_check
      _
    $region39: #{tpu_custom_call.1} parent=1 // pred_check_branch
      %75 = sbr.rel (0) target = $region41
    $region40: #{tpu_custom_call.1} parent=1 // pred_region
      %76 = dma.done [#allocation6], 1024
    $region41: #{tpu_custom_call.1} parent=1 // pred_fallthru
      _
    // Predicated region
    $region42: #{tpu_custom_call.1} parent=1 // pred_check
      _
    $region43: #{tpu_custom_call.1} parent=1 // pred_check_branch
      %78 = sbr.rel (0) target = $region45
    $region44: #{tpu_custom_call.1} parent=1 // pred_region
      %79 = dma.done [#allocation9], 1024
    $region45: #{tpu_custom_call.1} parent=1 // pred_fallthru
      _
    %v81 = vld [vmem:[#allocation2] sm:$0xff]
    %v82 = vld [vmem:[#allocation5] sm:$0xf]
    %v83 = vld [vmem:[#allocation5 + $0x4] sm:$0xf]
    %v84 = vld [vmem:[#allocation5 + $0x8] sm:$0xf]
    %v85 = vld [vmem:[#allocation5 + $0xc] sm:$0xf]
    %v86 = vld [vmem:[%s2] sm:$0x1]
    %v87 = vpack.c.bf16 %v81, %v81
    %v89 = vlaneseq
    %v90 = vshrl.u32 %v89, 7
    %v91 = vsub.s32 0, %v90
    %v92 = vrot.slane %v86, %v91
    %v98 = vunpack.c.l.b16 %v82
    %v99 = vunpack.c.l.b16 %v83
    %v100 = vunpack.c.l.b16 %v84
    %v101 = vunpack.c.l.b16 %v85
    %v102 = vpack.c.b16 %v99, %v98
    %v103 = vpack.c.b16 %v101, %v100
    %vm106 = vcmask 261120
    %v108 = vsel %vm106, %v87, 0
    %110 = vmatprep.subr.bf16.mxu0 0
    %111 = vmatpush1.bf16.msra.mxu0 %v102
    %112 = vmatprep.subr.bf16.mxu0 0
    %113 = vmatpush1.bf16.msra.mxu0 %v103
    %114 = vmatprep.subr.bf16.mxu0 0
    %115 = vmatpush1.bf16.msra.mxu0 0
    %116 = vmatprep.subr.bf16.mxu0 0
    %117 = vmatpush1.bf16.msra.mxu0 0
    %118 = vmatprep.subr.bf16.mxu0 0
    %119 = vmatpush1.bf16.msra.mxu0 0
    %120 = vmatprep.subr.bf16.mxu0 0
    %121 = vmatpush1.bf16.msra.mxu0 0
    %122 = vmatprep.subr.bf16.mxu0 0
    %123 = vmatpush1.bf16.msra.mxu0 0
    %124 = vmatprep.subr.bf16.mxu0 0
    %125 = vmatpush1.bf16.msra.mxu0 0
    %126 = vmatprep.subr.bf16.mxu0 0
    %127 = vmatpush1.bf16.msra.mxu0 0
    %128 = vmatprep.subr.bf16.mxu0 0
    %129 = vmatpush1.bf16.msra.mxu0 0
    %130 = vmatprep.subr.bf16.mxu0 0
    %131 = vmatpush1.bf16.msra.mxu0 0
    %132 = vmatprep.subr.bf16.mxu0 0
    %133 = vmatpush1.bf16.msra.mxu0 0
    %134 = vmatprep.subr.bf16.mxu0 0
    %135 = vmatpush1.bf16.msra.mxu0 0
    %136 = vmatprep.subr.bf16.mxu0 0
    %137 = vmatpush1.bf16.msra.mxu0 0
    %138 = vmatprep.subr.bf16.mxu0 0
    %139 = vmatpush1.bf16.msra.mxu0 0
    %140 = vmatprep.subr.bf16.mxu0 0
    %141 = vmatpush1.bf16.msra.mxu0 0
    %142 = vmatprep.mubr.bf16.mxu0 0
    %143 = vmatmul.mubr.bf16.gmra.mrb[0].mxu0 %v108
    %v144 = vpop.f32.mrb[0].mxu0
    %v145 = vadd.f32 %v92, %v144
    %v146 = vpop.f32.mrb[0].mxu0
    %v147 = vpop.f32.mrb[0].mxu0
    %v148 = vpop.f32.mrb[0].mxu0
    %149 = vdwg.mxu0
    %v150 = vmax.f32 %v145, 0.0
    %v151 = vld [vmem:[#allocation7] sm:$0xf]
    %v152 = vld [vmem:[#allocation7 + $0x4] sm:$0xf]
    %v153 = vld [vmem:[#allocation7 + $0x8] sm:$0xf]
    %v154 = vld [vmem:[#allocation7 + $0xc] sm:$0xf]
    %v155 = vld [vmem:[#allocation7 + $0x10] sm:$0xf]
    %v156 = vld [vmem:[#allocation7 + $0x14] sm:$0xf]
    %v157 = vld [vmem:[#allocation7 + $0x18] sm:$0xf]
    %v158 = vld [vmem:[#allocation7 + $0x1c] sm:$0xf]
    %v159 = vld [vmem:[#allocation7 + $0x20] sm:$0xf]
    %v160 = vld [vmem:[#allocation7 + $0x24] sm:$0xf]
    %v161 = vld [vmem:[#allocation7 + $0x28] sm:$0xf]
    %v162 = vld [vmem:[#allocation7 + $0x2c] sm:$0xf]
    %v163 = vld [vmem:[#allocation7 + $0x30] sm:$0xf]
    %v164 = vld [vmem:[#allocation7 + $0x34] sm:$0xf]
    %v165 = vld [vmem:[#allocation7 + $0x38] sm:$0xf]
    %v166 = vld [vmem:[#allocation7 + $0x3c] sm:$0xf]
    %v167 = vld [vmem:[%s4] sm:$0x1]
    %v168 = vpack.c.bf16 %v150, %v150
    %v170 = vlaneseq
    %v171 = vshrl.u32 %v170, 7
    %v172 = vsub.s32 0, %v171
    %v173 = vrot.slane %v167, %v172
    %v191 = vunpack.c.l.b16 %v151
    %v192 = vunpack.c.l.b16 %v152
    %v193 = vunpack.c.l.b16 %v153
    %v194 = vunpack.c.l.b16 %v154
    %v195 = vunpack.c.l.b16 %v155
    %v196 = vunpack.c.l.b16 %v156
    %v197 = vunpack.c.l.b16 %v157
    %v198 = vunpack.c.l.b16 %v158
    %v199 = vunpack.c.l.b16 %v159
    %v200 = vunpack.c.l.b16 %v160
    %v201 = vunpack.c.l.b16 %v161
    %v202 = vunpack.c.l.b16 %v162
    %v203 = vunpack.c.l.b16 %v163
    %v204 = vunpack.c.l.b16 %v164
    %v205 = vunpack.c.l.b16 %v165
    %v206 = vunpack.c.l.b16 %v166
    %v207 = vpack.c.b16 %v192, %v191
    %v208 = vpack.c.b16 %v194, %v193
    %v209 = vpack.c.b16 %v196, %v195
    %v210 = vpack.c.b16 %v198, %v197
    %v211 = vpack.c.b16 %v200, %v199
    %v212 = vpack.c.b16 %v202, %v201
    %v213 = vpack.c.b16 %v204, %v203
    %v214 = vpack.c.b16 %v206, %v205
    %223 = vmatprep.subr.bf16.mxu0 0
    %224 = vmatpush1.bf16.msra.mxu0 %v207
    %225 = vmatprep.subr.bf16.mxu0 0
    %226 = vmatpush1.bf16.msra.mxu0 %v208
    %227 = vmatprep.subr.bf16.mxu0 0
    %228 = vmatpush1.bf16.msra.mxu0 %v209
    %229 = vmatprep.subr.bf16.mxu0 0
    %230 = vmatpush1.bf16.msra.mxu0 %v210
    %231 = vmatprep.subr.bf16.mxu0 0
    %232 = vmatpush1.bf16.msra.mxu0 %v211
    %233 = vmatprep.subr.bf16.mxu0 0
    %234 = vmatpush1.bf16.msra.mxu0 %v212
    %235 = vmatprep.subr.bf16.mxu0 0
    %236 = vmatpush1.bf16.msra.mxu0 %v213
    %237 = vmatprep.subr.bf16.mxu0 0
    %238 = vmatpush1.bf16.msra.mxu0 %v214
    %239 = vmatprep.subr.bf16.mxu0 0
    %240 = vmatpush1.bf16.msra.mxu0 0
    %241 = vmatprep.subr.bf16.mxu0 0
    %242 = vmatpush1.bf16.msra.mxu0 0
    %243 = vmatprep.subr.bf16.mxu0 0
    %244 = vmatpush1.bf16.msra.mxu0 0
    %245 = vmatprep.subr.bf16.mxu0 0
    %246 = vmatpush1.bf16.msra.mxu0 0
    %247 = vmatprep.subr.bf16.mxu0 0
    %248 = vmatpush1.bf16.msra.mxu0 0
    %249 = vmatprep.subr.bf16.mxu0 0
    %250 = vmatpush1.bf16.msra.mxu0 0
    %251 = vmatprep.subr.bf16.mxu0 0
    %252 = vmatpush1.bf16.msra.mxu0 0
    %253 = vmatprep.subr.bf16.mxu0 0
    %254 = vmatpush1.bf16.msra.mxu0 0
    %255 = vmatprep.mubr.bf16.mxu0 0
    %256 = vmatmul.mubr.bf16.gmra.mrb[0].mxu0 %v168
    %v257 = vpop.f32.mrb[0].mxu0
    %v258 = vadd.f32 %v173, %v257
    %v259 = vpop.f32.mrb[0].mxu0
    %v260 = vpop.f32.mrb[0].mxu0
    %v261 = vpop.f32.mrb[0].mxu0
    %262 = vdwg.mxu0
    %v263 = vmax.f32 %v258, 0.0
    %v264 = vld [vmem:[#allocation8] sm:$0xf]
    %v265 = vld [vmem:[#allocation8 + $0x4] sm:$0xf]
    %v266 = vld [vmem:[#allocation8 + $0x8] sm:$0xf]
    %v267 = vld [vmem:[#allocation8 + $0xc] sm:$0xf]
    %v268 = vld [vmem:[#allocation8 + $0x10] sm:$0xf]
    %v269 = vld [vmem:[#allocation8 + $0x14] sm:$0xf]
    %v270 = vld [vmem:[#allocation8 + $0x18] sm:$0xf]
    %v271 = vld [vmem:[#allocation8 + $0x1c] sm:$0xf]
    %v272 = vld [vmem:[#allocation8 + $0x20] sm:$0xf]
    %v273 = vld [vmem:[#allocation8 + $0x24] sm:$0xf]
    %v274 = vld [vmem:[#allocation8 + $0x28] sm:$0xf]
    %v275 = vld [vmem:[#allocation8 + $0x2c] sm:$0xf]
    %v276 = vld [vmem:[#allocation8 + $0x30] sm:$0xf]
    %v277 = vld [vmem:[#allocation8 + $0x34] sm:$0xf]
    %v278 = vld [vmem:[#allocation8 + $0x38] sm:$0xf]
    %v279 = vld [vmem:[#allocation8 + $0x3c] sm:$0xf]
    %v280 = vld [vmem:[%s6] sm:$0x1]
    %v281 = vpack.c.bf16 %v263, %v263
    %v283 = vlaneseq
    %v284 = vshrl.u32 %v283, 7
    %v285 = vsub.s32 0, %v284
    %v286 = vrot.slane %v280, %v285
    %v304 = vunpack.c.l.b16 %v264
    %v305 = vunpack.c.l.b16 %v265
    %v306 = vunpack.c.l.b16 %v266
    %v307 = vunpack.c.l.b16 %v267
    %v308 = vunpack.c.l.b16 %v268
    %v309 = vunpack.c.l.b16 %v269
    %v310 = vunpack.c.l.b16 %v270
    %v311 = vunpack.c.l.b16 %v271
    %v312 = vunpack.c.l.b16 %v272
    %v313 = vunpack.c.l.b16 %v273
    %v314 = vunpack.c.l.b16 %v274
    %v315 = vunpack.c.l.b16 %v275
    %v316 = vunpack.c.l.b16 %v276
    %v317 = vunpack.c.l.b16 %v277
    %v318 = vunpack.c.l.b16 %v278
    %v319 = vunpack.c.l.b16 %v279
    %v320 = vpack.c.b16 %v305, %v304
    %v321 = vpack.c.b16 %v307, %v306
    %v322 = vpack.c.b16 %v309, %v308
    %v323 = vpack.c.b16 %v311, %v310
    %v324 = vpack.c.b16 %v313, %v312
    %v325 = vpack.c.b16 %v315, %v314
    %v326 = vpack.c.b16 %v317, %v316
    %v327 = vpack.c.b16 %v319, %v318
    %336 = vmatprep.subr.bf16.mxu0 0
    %337 = vmatpush1.bf16.msra.mxu0 %v320
    %338 = vmatprep.subr.bf16.mxu0 0
    %339 = vmatpush1.bf16.msra.mxu0 %v321
    %340 = vmatprep.subr.bf16.mxu0 0
    %341 = vmatpush1.bf16.msra.mxu0 %v322
    %342 = vmatprep.subr.bf16.mxu0 0
    %343 = vmatpush1.bf16.msra.mxu0 %v323
    %344 = vmatprep.subr.bf16.mxu0 0
    %345 = vmatpush1.bf16.msra.mxu0 %v324
    %346 = vmatprep.subr.bf16.mxu0 0
    %347 = vmatpush1.bf16.msra.mxu0 %v325
    %348 = vmatprep.subr.bf16.mxu0 0
    %349 = vmatpush1.bf16.msra.mxu0 %v326
    %350 = vmatprep.subr.bf16.mxu0 0
    %351 = vmatpush1.bf16.msra.mxu0 %v327
    %352 = vmatprep.subr.bf16.mxu0 0
    %353 = vmatpush1.bf16.msra.mxu0 0
    %354 = vmatprep.subr.bf16.mxu0 0
    %355 = vmatpush1.bf16.msra.mxu0 0
    %356 = vmatprep.subr.bf16.mxu0 0
    %357 = vmatpush1.bf16.msra.mxu0 0
    %358 = vmatprep.subr.bf16.mxu0 0
    %359 = vmatpush1.bf16.msra.mxu0 0
    %360 = vmatprep.subr.bf16.mxu0 0
    %361 = vmatpush1.bf16.msra.mxu0 0
    %362 = vmatprep.subr.bf16.mxu0 0
    %363 = vmatpush1.bf16.msra.mxu0 0
    %364 = vmatprep.subr.bf16.mxu0 0
    %365 = vmatpush1.bf16.msra.mxu0 0
    %366 = vmatprep.subr.bf16.mxu0 0
    %367 = vmatpush1.bf16.msra.mxu0 0
    %368 = vmatprep.mubr.bf16.mxu0 0
    %369 = vmatmul.mubr.bf16.gmra.mrb[0].mxu0 %v281
    %v370 = vpop.f32.mrb[0].mxu0
    %v371 = vadd.f32 %v286, %v370
    %v372 = vpop.f32.mrb[0].mxu0
    %v373 = vpop.f32.mrb[0].mxu0
    %v374 = vpop.f32.mrb[0].mxu0
    %375 = vdwg.mxu0
    %376 = vst [vmem:[#allocation10] sm:$0xff] %v371
    // Predicated region
    $region46: #{tpu_custom_call.1} parent=1 // pred_check
      _
    $region47: #{tpu_custom_call.1} parent=1 // pred_check_branch
      %378 = sbr.rel (0) target = $region49
    $region48: #{tpu_custom_call.1} parent=1 // pred_region
      %s380 = ssub.s32 128, 128
      %381 = vsyncadd [#allocation4], %s380
      %s383 = sshll.u32 [#allocation10], 4
      %s384 = int_to_ptr.vmem [resolvable:$true] %s383
      %386 = dma.vmem_to_hbm [thread:$0]  %s384, 128, %s7, [#allocation4]
    $region49: #{tpu_custom_call.1} parent=1 // pred_fallthru
      _
    // Predicated region
    $region50: #{tpu_custom_call.1} parent=1 // pred_check
      _
    $region51: #{tpu_custom_call.1} parent=1 // pred_check_branch
      %388 = sbr.rel (0) target = $region53
    $region52: #{tpu_custom_call.1} parent=1 // pred_region
      %389 = dma.done [#allocation4], 128
    $region53: #{tpu_custom_call.1} parent=1 // pred_fallthru
      _
    %390 = vsyncpa [#allocation3], 1
    %391 = vsyncpa [#allocation6], 1
    %392 = vsyncpa [#allocation9], 1
    %393 = vsyncpa [#allocation4], 1

// kernel: tpu_custom_call.1
$region0: #{tpu_custom_call.1}
  #allocation0 [shape = 'u32[]', space=smem, size = 0x4, offset = 0x4, fixed_abs, tag = 'smem constant byte address 0x4 - core index']
  #allocation1 [shape = 'u32[144,128]{1,0:T(1,128)}', space=vmem, size = 0x12000, scoped, tag = 'internal scratch']
  %s0 = inlined_call_operand.hbm [shape: f32[8,32], index: 0, kind: input, shape index: {}]
  %s1 = inlined_call_operand.hbm [shape: bf16[32,128], index: 1, kind: input, shape index: {}]
  %s2 = inlined_call_operand.vmem [shape: f32[1,128], index: 2, kind: input, shape index: {}]
  %s3 = inlined_call_operand.hbm [shape: bf16[128,128], index: 3, kind: input, shape index: {}]
  %s4 = inlined_call_operand.vmem [shape: f32[1,128], index: 4, kind: input, shape index: {}]
  %s5 = inlined_call_operand.hbm [shape: bf16[128,128], index: 5, kind: input, shape index: {}]
  %s6 = inlined_call_operand.vmem [shape: f32[1,128], index: 6, kind: input, shape index: {}]
  %s7 = inlined_call_operand.hbm [shape: f32[8,128], index: 7, kind: output, shape index: {}]
  %s8 = sld [smem:[#allocation0]]
  $region54: #{tpu_custom_call.1} parent=0
    _
  %s10 = ssub.s32 1, %s8
  %s11 = scalar_select 0, %s10, %s8
  $region1: #{tpu_custom_call.1} parent=0
    #allocation2 [shape = 'u8[4096]{0}', space=vmem, size = 0x1000, scoped, tag = 'input window, operand 0, single buffered']
    #allocation3 [shape = 's32[1]{0}', space=sflag, size = 0x4, scoped, tag = 'scoped memory for tpu_custom_call.1']
    #allocation4 [shape = 's32[1]{0}', space=sflag, size = 0x4, scoped, tag = 'scoped memory for tpu_custom_call.1']
    #allocation5 [shape = 'u8[8192]{0}', space=vmem, size = 0x2000, scoped, tag = 'input window, operand 1, single buffered']
    #allocation6 [shape = 's32[1]{0}', space=sflag, size = 0x4, scoped, tag = 'scoped memory for tpu_custom_call.1']
    #allocation7 [shape = 'u8[32768]{0}', space=vmem, size = 0x8000, scoped, tag = 'input window, operand 3, single buffered']
    #allocation8 [shape = 'u8[32768]{0}', space=vmem, size = 0x8000, scoped, tag = 'input window, operand 5, single buffered']
    #allocation9 [shape = 's32[1]{0}', space=sflag, size = 0x4, scoped, tag = 'scoped memory for tpu_custom_call.1']
    #allocation10 [shape = 'u8[4096]{0}', space=vmem, size = 0x1000, scoped, tag = 'output window, operand 0, single buffered']
    %12 = vsyncpa [#allocation3], 0
    %13 = vsyncpa [#allocation6], 0
    %14 = vsyncpa [#allocation9], 0
    %15 = vsyncpa [#allocation4], 0
    // Predicated region
    $region2: #{tpu_custom_call.1} parent=1 // pred_check
      _
    $region3: #{tpu_custom_call.1} parent=1 // pred_check_branch
      %17 = sbr.rel (0) target = $region5
    $region4: #{tpu_custom_call.1} parent=1 // pred_region
      %s19 = ssub.s32 128, 128
      %20 = vsyncadd [#allocation3], %s19
      %s22 = sshll.u32 [#allocation2], 4
      %s23 = int_to_ptr.vmem [resolvable:$true] %s22
      %25 = dma.hbm_to_vmem [thread:$0]  %s0, 128, %s23, [#allocation3]
    $region5: #{tpu_custom_call.1} parent=1 // pred_fallthru
      _
    // Predicated region
    $region6: #{tpu_custom_call.1} parent=1 // pred_check
      _
    $region7: #{tpu_custom_call.1} parent=1 // pred_check_branch
      %27 = sbr.rel (0) target = $region9
    $region8: #{tpu_custom_call.1} parent=1 // pred_region
      %s29 = ssub.s32 256, 256
      %30 = vsyncadd [#allocation6], %s29
      %s31 = sshll.u32 [#allocation5], 4
      %s32 = int_to_ptr.vmem [resolvable:$true] %s31
      %37 = dma.hbm_to_vmem [thread:$0]  %s1, 256, %s32, [#allocation6], 64, 64, 4
    $region9: #{tpu_custom_call.1} parent=1 // pred_fallthru
      _
    // Predicated region
    $region10: #{tpu_custom_call.1} parent=1 // pred_check
      _
    $region11: #{tpu_custom_call.1} parent=1 // pred_check_branch
      %39 = sbr.rel (0) target = $region13
    $region12: #{tpu_custom_call.1} parent=1 // pred_region
      _
    $region13: #{tpu_custom_call.1} parent=1 // pred_fallthru
      _
    // Predicated region
    $region14: #{tpu_custom_call.1} parent=1 // pred_check
      _
    $region15: #{tpu_custom_call.1} parent=1 // pred_check_branch
      %41 = sbr.rel (0) target = $region17
    $region16: #{tpu_custom_call.1} parent=1 // pred_region
      %s43 = ssub.s32 1024, 1024
      %44 = vsyncadd [#allocation6], %s43
      %s45 = sshll.u32 [#allocation7], 4
      %s46 = int_to_ptr.vmem [resolvable:$true] %s45
      %51 = dma.hbm_to_vmem [thread:$0]  %s3, 1024, %s46, [#allocation6], 64, 64, 4
    $region17: #{tpu_custom_call.1} parent=1 // pred_fallthru
      _
    // Predicated region
    $region18: #{tpu_custom_call.1} parent=1 // pred_check
      _
    $region19: #{tpu_custom_call.1} parent=1 // pred_check_branch
      %53 = sbr.rel (0) target = $region21
    $region20: #{tpu_custom_call.1} parent=1 // pred_region
      _
    $region21: #{tpu_custom_call.1} parent=1 // pred_fallthru
      _
    // Predicated region
    $region22: #{tpu_custom_call.1} parent=1 // pred_check
      _
    $region23: #{tpu_custom_call.1} parent=1 // pred_check_branch
      %55 = sbr.rel (0) target = $region25
    $region24: #{tpu_custom_call.1} parent=1 // pred_region
      %s57 = ssub.s32 1024, 1024
      %58 = vsyncadd [#allocation9], %s57
      %s59 = sshll.u32 [#allocation8], 4
      %s60 = int_to_ptr.vmem [resolvable:$true] %s59
      %65 = dma.hbm_to_vmem [thread:$0]  %s5, 1024, %s60, [#allocation9], 64, 64, 4
    $region25: #{tpu_custom_call.1} parent=1 // pred_fallthru
      _
    // Predicated region
    $region26: #{tpu_custom_call.1} parent=1 // pred_check
      _
    $region27: #{tpu_custom_call.1} parent=1 // pred_check_branch
      %67 = sbr.rel (0) target = $region29
    $region28: #{tpu_custom_call.1} parent=1 // pred_region
      _
    $region29: #{tpu_custom_call.1} parent=1 // pred_fallthru
      _
    // Predicated region
    $region30: #{tpu_custom_call.1} parent=1 // pred_check
      _
    $region31: #{tpu_custom_call.1} parent=1 // pred_check_branch
      %69 = sbr.rel (0) target = $region33
    $region32: #{tpu_custom_call.1} parent=1 // pred_region
      %70 = dma.done [#allocation3], 128
    $region33: #{tpu_custom_call.1} parent=1 // pred_fallthru
      _
    // Predicated region
    $region34: #{tpu_custom_call.1} parent=1 // pred_check
      _
    $region35: #{tpu_custom_call.1} parent=1 // pred_check_branch
      %72 = sbr.rel (0) target = $region37
    $region36: #{tpu_custom_call.1} parent=1 // pred_region
      %73 = dma.done [#allocation6], 256
    $region37: #{tpu_custom_call.1} parent=1 // pred_fallthru
      _
    // Predicated region
    $region38: #{tpu_custom_call.1} parent=1 // pred_check
      _
    $region39: #{tpu_custom_call.1} parent=1 // pred_check_branch
      %75 = sbr.rel (0) target = $region41
    $region40: #{tpu_custom_call.1} parent=1 // pred_region
      %76 = dma.done [#allocation6], 1024
    $region41: #{tpu_custom_call.1} parent=1 // pred_fallthru
      _
    // Predicated region
    $region42: #{tpu_custom_call.1} parent=1 // pred_check
      _
    $region43: #{tpu_custom_call.1} parent=1 // pred_check_branch
      %78 = sbr.rel (0) target = $region45
    $region44: #{tpu_custom_call.1} parent=1 // pred_region
      %79 = dma.done [#allocation9], 1024
    $region45: #{tpu_custom_call.1} parent=1 // pred_fallthru
      _
    %v81 = vld [vmem:[#allocation2] sm:$0xff]
    %v82 = vld [vmem:[#allocation5] sm:$0xf]
    %v83 = vld [vmem:[#allocation5 + $0x4] sm:$0xf]
    %v84 = vld [vmem:[#allocation5 + $0x8] sm:$0xf]
    %v85 = vld [vmem:[#allocation5 + $0xc] sm:$0xf]
    %v86 = vld [vmem:[%s2] sm:$0x1]
    %v87 = vpack.c.bf16 %v81, %v81
    %v89 = vlaneseq
    %v90 = vshrl.u32 %v89, 7
    %v91 = vsub.s32 0, %v90
    %v92 = vrot.slane %v86, %v91
    %v98 = vunpack.c.l.b16 %v82
    %v99 = vunpack.c.l.b16 %v83
    %v100 = vunpack.c.l.b16 %v84
    %v101 = vunpack.c.l.b16 %v85
    %v102 = vpack.c.b16 %v99, %v98
    %v103 = vpack.c.b16 %v101, %v100
    %vm106 = vcmask 261120
    %v108 = vsel %vm106, %v87, 0
    %110 = vmatprep.subr.bf16.mxu0 0
    %111 = vmatpush1.bf16.msra.mxu0 %v102
    %112 = vmatprep.subr.bf16.mxu0 0
    %113 = vmatpush1.bf16.msra.mxu0 %v103
    %114 = vmatprep.subr.bf16.mxu0 0
    %115 = vmatpush1.bf16.msra.mxu0 0
    %116 = vmatprep.subr.bf16.mxu0 0
    %117 = vmatpush1.bf16.msra.mxu0 0
    %118 = vmatprep.subr.bf16.mxu0 0
    %119 = vmatpush1.bf16.msra.mxu0 0
    %120 = vmatprep.subr.bf16.mxu0 0
    %121 = vmatpush1.bf16.msra.mxu0 0
    %122 = vmatprep.subr.bf16.mxu0 0
    %123 = vmatpush1.bf16.msra.mxu0 0
    %124 = vmatprep.subr.bf16.mxu0 0
    %125 = vmatpush1.bf16.msra.mxu0 0
    %126 = vmatprep.subr.bf16.mxu0 0
    %127 = vmatpush1.bf16.msra.mxu0 0
    %128 = vmatprep.subr.bf16.mxu0 0
    %129 = vmatpush1.bf16.msra.mxu0 0
    %130 = vmatprep.subr.bf16.mxu0 0
    %131 = vmatpush1.bf16.msra.mxu0 0
    %132 = vmatprep.subr.bf16.mxu0 0
    %133 = vmatpush1.bf16.msra.mxu0 0
    %134 = vmatprep.subr.bf16.mxu0 0
    %135 = vmatpush1.bf16.msra.mxu0 0
    %136 = vmatprep.subr.bf16.mxu0 0
    %137 = vmatpush1.bf16.msra.mxu0 0
    %138 = vmatprep.subr.bf16.mxu0 0
    %139 = vmatpush1.bf16.msra.mxu0 0
    %140 = vmatprep.subr.bf16.mxu0 0
    %141 = vmatpush1.bf16.msra.mxu0 0
    %142 = vmatprep.mubr.bf16.mxu0 0
    %143 = vmatmul.mubr.bf16.gmra.mrb[0].mxu0 %v108
    %v144 = vpop.f32.mrb[0].mxu0
    %v145 = vadd.f32 %v92, %v144
    %v146 = vpop.f32.mrb[0].mxu0
    %v147 = vpop.f32.mrb[0].mxu0
    %v148 = vpop.f32.mrb[0].mxu0
    %149 = vdwg.mxu0
    %v150 = vmax.f32 %v145, 0.0
    %v151 = vld [vmem:[#allocation7] sm:$0xf]
    %v152 = vld [vmem:[#allocation7 + $0x4] sm:$0xf]
    %v153 = vld [vmem:[#allocation7 + $0x8] sm:$0xf]
    %v154 = vld [vmem:[#allocation7 + $0xc] sm:$0xf]
    %v155 = vld [vmem:[#allocation7 + $0x10] sm:$0xf]
    %v156 = vld [vmem:[#allocation7 + $0x14] sm:$0xf]
    %v157 = vld [vmem:[#allocation7 + $0x18] sm:$0xf]
    %v158 = vld [vmem:[#allocation7 + $0x1c] sm:$0xf]
    %v159 = vld [vmem:[#allocation7 + $0x20] sm:$0xf]
    %v160 = vld [vmem:[#allocation7 + $0x24] sm:$0xf]
    %v161 = vld [vmem:[#allocation7 + $0x28] sm:$0xf]
    %v162 = vld [vmem:[#allocation7 + $0x2c] sm:$0xf]
    %v163 = vld [vmem:[#allocation7 + $0x30] sm:$0xf]
    %v164 = vld [vmem:[#allocation7 + $0x34] sm:$0xf]
    %v165 = vld [vmem:[#allocation7 + $0x38] sm:$0xf]
    %v166 = vld [vmem:[#allocation7 + $0x3c] sm:$0xf]
    %v167 = vld [vmem:[%s4] sm:$0x1]
    %v168 = vpack.c.bf16 %v150, %v150
    %v170 = vlaneseq
    %v171 = vshrl.u32 %v170, 7
    %v172 = vsub.s32 0, %v171
    %v173 = vrot.slane %v167, %v172
    %v191 = vunpack.c.l.b16 %v151
    %v192 = vunpack.c.l.b16 %v152
    %v193 = vunpack.c.l.b16 %v153
    %v194 = vunpack.c.l.b16 %v154
    %v195 = vunpack.c.l.b16 %v155
    %v196 = vunpack.c.l.b16 %v156
    %v197 = vunpack.c.l.b16 %v157
    %v198 = vunpack.c.l.b16 %v158
    %v199 = vunpack.c.l.b16 %v159
    %v200 = vunpack.c.l.b16 %v160
    %v201 = vunpack.c.l.b16 %v161
    %v202 = vunpack.c.l.b16 %v162
    %v203 = vunpack.c.l.b16 %v163
    %v204 = vunpack.c.l.b16 %v164
    %v205 = vunpack.c.l.b16 %v165
    %v206 = vunpack.c.l.b16 %v166
    %v207 = vpack.c.b16 %v192, %v191
    %v208 = vpack.c.b16 %v194, %v193
    %v209 = vpack.c.b16 %v196, %v195
    %v210 = vpack.c.b16 %v198, %v197
    %v211 = vpack.c.b16 %v200, %v199
    %v212 = vpack.c.b16 %v202, %v201
    %v213 = vpack.c.b16 %v204, %v203
    %v214 = vpack.c.b16 %v206, %v205
    %223 = vmatprep.subr.bf16.mxu0 0
    %224 = vmatpush1.bf16.msra.mxu0 %v207
    %225 = vmatprep.subr.bf16.mxu0 0
    %226 = vmatpush1.bf16.msra.mxu0 %v208
    %227 = vmatprep.subr.bf16.mxu0 0
    %228 = vmatpush1.bf16.msra.mxu0 %v209
    %229 = vmatprep.subr.bf16.mxu0 0
    %230 = vmatpush1.bf16.msra.mxu0 %v210
    %231 = vmatprep.subr.bf16.mxu0 0
    %232 = vmatpush1.bf16.msra.mxu0 %v211
    %233 = vmatprep.subr.bf16.mxu0 0
    %234 = vmatpush1.bf16.msra.mxu0 %v212
    %235 = vmatprep.subr.bf16.mxu0 0
    %236 = vmatpush1.bf16.msra.mxu0 %v213
    %237 = vmatprep.subr.bf16.mxu0 0
    %238 = vmatpush1.bf16.msra.mxu0 %v214
    %239 = vmatprep.subr.bf16.mxu0 0
    %240 = vmatpush1.bf16.msra.mxu0 0
    %241 = vmatprep.subr.bf16.mxu0 0
    %242 = vmatpush1.bf16.msra.mxu0 0
    %243 = vmatprep.subr.bf16.mxu0 0
    %244 = vmatpush1.bf16.msra.mxu0 0
    %245 = vmatprep.subr.bf16.mxu0 0
    %246 = vmatpush1.bf16.msra.mxu0 0
    %247 = vmatprep.subr.bf16.mxu0 0
    %248 = vmatpush1.bf16.msra.mxu0 0
    %249 = vmatprep.subr.bf16.mxu0 0
    %250 = vmatpush1.bf16.msra.mxu0 0
    %251 = vmatprep.subr.bf16.mxu0 0
    %252 = vmatpush1.bf16.msra.mxu0 0
    %253 = vmatprep.subr.bf16.mxu0 0
    %254 = vmatpush1.bf16.msra.mxu0 0
    %255 = vmatprep.mubr.bf16.mxu0 0
    %256 = vmatmul.mubr.bf16.gmra.mrb[0].mxu0 %v168
    %v257 = vpop.f32.mrb[0].mxu0
    %v258 = vadd.f32 %v173, %v257
    %v259 = vpop.f32.mrb[0].mxu0
    %v260 = vpop.f32.mrb[0].mxu0
    %v261 = vpop.f32.mrb[0].mxu0
    %262 = vdwg.mxu0
    %v263 = vmax.f32 %v258, 0.0
    %v264 = vld [vmem:[#allocation8] sm:$0xf]
    %v265 = vld [vmem:[#allocation8 + $0x4] sm:$0xf]
    %v266 = vld [vmem:[#allocation8 + $0x8] sm:$0xf]
    %v267 = vld [vmem:[#allocation8 + $0xc] sm:$0xf]
    %v268 = vld [vmem:[#allocation8 + $0x10] sm:$0xf]
    %v269 = vld [vmem:[#allocation8 + $0x14] sm:$0xf]
    %v270 = vld [vmem:[#allocation8 + $0x18] sm:$0xf]
    %v271 = vld [vmem:[#allocation8 + $0x1c] sm:$0xf]
    %v272 = vld [vmem:[#allocation8 + $0x20] sm:$0xf]
    %v273 = vld [vmem:[#allocation8 + $0x24] sm:$0xf]
    %v274 = vld [vmem:[#allocation8 + $0x28] sm:$0xf]
    %v275 = vld [vmem:[#allocation8 + $0x2c] sm:$0xf]
    %v276 = vld [vmem:[#allocation8 + $0x30] sm:$0xf]
    %v277 = vld [vmem:[#allocation8 + $0x34] sm:$0xf]
    %v278 = vld [vmem:[#allocation8 + $0x38] sm:$0xf]
    %v279 = vld [vmem:[#allocation8 + $0x3c] sm:$0xf]
    %v280 = vld [vmem:[%s6] sm:$0x1]
    %v281 = vpack.c.bf16 %v263, %v263
    %v283 = vlaneseq
    %v284 = vshrl.u32 %v283, 7
    %v285 = vsub.s32 0, %v284
    %v286 = vrot.slane %v280, %v285
    %v304 = vunpack.c.l.b16 %v264
    %v305 = vunpack.c.l.b16 %v265
    %v306 = vunpack.c.l.b16 %v266
    %v307 = vunpack.c.l.b16 %v267
    %v308 = vunpack.c.l.b16 %v268
    %v309 = vunpack.c.l.b16 %v269
    %v310 = vunpack.c.l.b16 %v270
    %v311 = vunpack.c.l.b16 %v271
    %v312 = vunpack.c.l.b16 %v272
    %v313 = vunpack.c.l.b16 %v273
    %v314 = vunpack.c.l.b16 %v274
    %v315 = vunpack.c.l.b16 %v275
    %v316 = vunpack.c.l.b16 %v276
    %v317 = vunpack.c.l.b16 %v277
    %v318 = vunpack.c.l.b16 %v278
    %v319 = vunpack.c.l.b16 %v279
    %v320 = vpack.c.b16 %v305, %v304
    %v321 = vpack.c.b16 %v307, %v306
    %v322 = vpack.c.b16 %v309, %v308
    %v323 = vpack.c.b16 %v311, %v310
    %v324 = vpack.c.b16 %v313, %v312
    %v325 = vpack.c.b16 %v315, %v314
    %v326 = vpack.c.b16 %v317, %v316
    %v327 = vpack.c.b16 %v319, %v318
    %336 = vmatprep.subr.bf16.mxu0 0
    %337 = vmatpush1.bf16.msra.mxu0 %v320
    %338 = vmatprep.subr.bf16.mxu0 0
    %339 = vmatpush1.bf16.msra.mxu0 %v321
    %340 = vmatprep.subr.bf16.mxu0 0
    %341 = vmatpush1.bf16.msra.mxu0 %v322
    %342 = vmatprep.subr.bf16.mxu0 0
    %343 = vmatpush1.bf16.msra.mxu0 %v323
    %344 = vmatprep.subr.bf16.mxu0 0
    %345 = vmatpush1.bf16.msra.mxu0 %v324
    %346 = vmatprep.subr.bf16.mxu0 0
    %347 = vmatpush1.bf16.msra.mxu0 %v325
    %348 = vmatprep.subr.bf16.mxu0 0
    %349 = vmatpush1.bf16.msra.mxu0 %v326
    %350 = vmatprep.subr.bf16.mxu0 0
    %351 = vmatpush1.bf16.msra.mxu0 %v327
    %352 = vmatprep.subr.bf16.mxu0 0
    %353 = vmatpush1.bf16.msra.mxu0 0
    %354 = vmatprep.subr.bf16.mxu0 0
    %355 = vmatpush1.bf16.msra.mxu0 0
    %356 = vmatprep.subr.bf16.mxu0 0
    %357 = vmatpush1.bf16.msra.mxu0 0
    %358 = vmatprep.subr.bf16.mxu0 0
    %359 = vmatpush1.bf16.msra.mxu0 0
    %360 = vmatprep.subr.bf16.mxu0 0
    %361 = vmatpush1.bf16.msra.mxu0 0
    %362 = vmatprep.subr.bf16.mxu0 0
    %363 = vmatpush1.bf16.msra.mxu0 0
    %364 = vmatprep.subr.bf16.mxu0 0
    %365 = vmatpush1.bf16.msra.mxu0 0
    %366 = vmatprep.subr.bf16.mxu0 0
    %367 = vmatpush1.bf16.msra.mxu0 0
    %368 = vmatprep.mubr.bf16.mxu0 0
    %369 = vmatmul.mubr.bf16.gmra.mrb[0].mxu0 %v281
    %v370 = vpop.f32.mrb[0].mxu0
    %v371 = vadd.f32 %v286, %v370
    %v372 = vpop.f32.mrb[0].mxu0
    %v373 = vpop.f32.mrb[0].mxu0
    %v374 = vpop.f32.mrb[0].mxu0
    %375 = vdwg.mxu0
    %376 = vst [vmem:[#allocation10] sm:$0xff] %v371
    // Predicated region
    $region46: #{tpu_custom_call.1} parent=1 // pred_check
      _
    $region47: #{tpu_custom_call.1} parent=1 // pred_check_branch
      %378 = sbr.rel (0) target = $region49
    $region48: #{tpu_custom_call.1} parent=1 // pred_region
      %s380 = ssub.s32 128, 128
      %381 = vsyncadd [#allocation4], %s380
      %s383 = sshll.u32 [#allocation10], 4
      %s384 = int_to_ptr.vmem [resolvable:$true] %s383
      %386 = dma.vmem_to_hbm [thread:$0]  %s384, 128, %s7, [#allocation4]
    $region49: #{tpu_custom_call.1} parent=1 // pred_fallthru
      _
    // Predicated region
    $region50: #{tpu_custom_call.1} parent=1 // pred_check
      _
    $region51: #{tpu_custom_call.1} parent=1 // pred_check_branch
      %388 = sbr.rel (0) target = $region53
    $region52: #{tpu_custom_call.1} parent=1 // pred_region
      %389 = dma.done [#allocation4], 128
    $region53: #{tpu_custom_call.1} parent=1 // pred_fallthru
      _
    %390 = vsyncpa [#allocation3], 1
    %391 = vsyncpa [#allocation6], 1
    %392 = vsyncpa [#allocation9], 1
    %393 = vsyncpa [#allocation4], 1

</llo_original>
